<compile_context>
chip_gen: v6e
topology: v6e:2x2x1
jax: 0.10.0
libtpu: 0.0.40
codegen_flags: <defaults>
</compile_context>

<pallas_src>
import functools

import jax
import jax.numpy as jnp
from jax.experimental import pallas as pl
from jax.experimental.pallas import tpu as pltpu

ALPHA = 0.7
BETA = 0.3
NUM_CLASSES = 6
CLAMP_MIN = 0.0001
NEG_LOG_CLAMP = 9.210340371976184  # -log(1e-4)


def _cdiv(a, b):
    return (a + b - 1) // b


def _round_up(a, b):
    return _cdiv(a, b) * b


def _sce_kernel(logits_ref, targets_ref, out_ref, *, num_classes, tile_rows):
    i = pl.program_id(1)  # position along the "arbitrary" (accumulation) axis

    @pl.when(i == 0)
    def _init():
        out_ref[...] = jnp.zeros_like(out_ref)

    tgt = targets_ref[...].astype(jnp.int32)  # [tile_rows, 128], padded rows are -1

    # Per-class planes, batch dense on (sublane, lane). Cast after the DMA so
    # HBM traffic stays in the input's native dtype.
    rows = [logits_ref[c].astype(jnp.float32) for c in range(num_classes)]

    # Row-wise max over classes: unrolled VPU maximums (no XLU reduce).
    m = rows[0]
    for c in range(1, num_classes):
        m = jnp.maximum(m, rows[c])

    # sum_c exp(l_c - m), plus the target logit and the target's exp (reused
    # for RCE instead of a 7th exp).
    e = jnp.exp(rows[0] - m)
    sumexp = e
    tgt_logit = jnp.where(tgt == 0, rows[0], 0.0)
    tgt_exp = jnp.where(tgt == 0, e, 0.0)
    for c in range(1, num_classes):
        e = jnp.exp(rows[c] - m)
        sumexp = sumexp + e
        tgt_logit = jnp.where(tgt == c, rows[c], tgt_logit)
        tgt_exp = jnp.where(tgt == c, e, tgt_exp)

    lse = jnp.log(sumexp) + m                 # [tile_rows, 128]
    ce = lse - tgt_logit                      # per-sample cross entropy
    p_tgt = tgt_exp * pl.reciprocal(sumexp, approx=True)   # softmax[target]
    rce = NEG_LOG_CLAMP * (1.0 - p_tgt)       # simplified reverse CE

    loss = ALPHA * ce + BETA * rce
    # Select-based masking (NOT multiply): garbage / Inf / NaN in padded or
    # partial blocks cannot poison the sum.
    loss = jnp.where(tgt >= 0, loss, 0.0)

    # Per-lane partial sums: [tile_rows,128] -> [tile_rows//8, 8, 128] summed
    # over the leading axis = pure VPU vreg adds (no XLU per step).
    partial = jnp.sum(loss.reshape(tile_rows // 8, 8, 128), axis=0)  # [8, 128]
    out_ref[...] = out_ref[...] + partial.reshape(1, 8, 128)


def sce_loss(logits, targets, *, tile_rows=512, num_slices=2):
    """logits: [N, C] float, targets: [N] int.  Returns scalar f32 SCE loss."""
    n, c = logits.shape
    assert c == NUM_CLASSES, (c, NUM_CLASSES)
    assert targets.shape == (n,)

    # Batch geometry: groups of 128 samples on lanes, tile_rows groups of 8
    # sublanes per grid step (tile_rows multiple of 32 for the int8 targets).
    n128 = _cdiv(n, 128)
    tile_rows = max(32, min(tile_rows, _round_up(n128, 32)))
    tile_rows = _round_up(tile_rows, 32)
    row_tiles = _cdiv(n128, tile_rows)
    rows_pad = row_tiles * tile_rows          # logits rows (bounded pad)

    num_slices = max(1, min(num_slices, row_tiles))
    tiles_per_slice = _cdiv(row_tiles, num_slices)
    total_rows = num_slices * tiles_per_slice * tile_rows  # targets rows

    # Logits: [N, C] -> [C, N] -> pad cols -> [C, rows_pad, 128].
    # The transpose is one HBM copy; the small pad + free reshape fuse into it.
    # TODO(synk): have the producer emit logits as [C, N] (fold the transpose
    # into the preceding projection matmul) to drop this copy entirely.
    logits_t = jnp.transpose(logits)
    pad_cols = rows_pad * 128 - n
    if pad_cols:
        logits_t = jnp.pad(logits_t, ((0, 0), (0, pad_cols)))
    logits_r = logits_t.reshape(c, rows_pad, 128)

    # Targets: int8 (1 B/sample of HBM traffic), padded with -1 so every grid
    # step (including overflow steps of the slice split) sees defined targets.
    targets_p = jnp.pad(targets.astype(jnp.int8), (0, total_rows * 128 - n),
                        constant_values=-1)
    targets_r = targets_p.reshape(total_rows, 128)

    if num_slices * tiles_per_slice == row_tiles:
        def logits_index(p, i):
            return (0, p * tiles_per_slice + i, 0)
    else:
        # Overflow steps re-read the last valid logits tile; their targets are
        # all -1 so they contribute nothing.
        def logits_index(p, i):
            return (0, jnp.minimum(p * tiles_per_slice + i, row_tiles - 1), 0)

    def targets_index(p, i):
        return (p * tiles_per_slice + i, 0)

    kernel = functools.partial(_sce_kernel, num_classes=c, tile_rows=tile_rows)

    partials = pl.pallas_call(
        kernel,
        out_shape=jax.ShapeDtypeStruct((num_slices, 8, 128), jnp.float32),
        grid=(num_slices, tiles_per_slice),
        in_specs=[
            pl.BlockSpec((c, tile_rows, 128), logits_index),
            pl.BlockSpec((tile_rows, 128), targets_index),
        ],
        out_specs=pl.BlockSpec((1, 8, 128), lambda p, i: (p, 0, 0)),
        compiler_params=pltpu.CompilerParams(
            dimension_semantics=("parallel", "arbitrary"),
            vmem_limit_bytes=32 * 1024 * 1024,
        ),
    )(logits_r, targets_r)

    # Tiny final reduce of the per-lane partials + 1/N scale (uses the true N).
    return jnp.sum(partials) * jnp.float32(1.0 / n)


def _sce_loss_ref(logits, targets):
    """Plain-JAX reference mirroring the PyTorch module."""
    logits = logits.astype(jnp.float32)
    logp = jax.nn.log_softmax(logits, axis=1)
    ce = -jnp.take_along_axis(logp, targets[:, None], axis=1).mean()
    probs = jax.nn.softmax(logits, axis=1)
    onehot = jax.nn.one_hot(targets, NUM_CLASSES, dtype=jnp.float32)
    onehot = jnp.clip(onehot, CLAMP_MIN, 1.0)
    rce = (-probs * jnp.log(onehot)).sum(axis=1).mean()
    return ALPHA * ce + BETA * rce


if __name__ == "__main__":
    key = jax.random.PRNGKey(0)
    k1, k2, k3, k4 = jax.random.split(key, 4)

    # Tolerances allow for the EUP approx reciprocal used for softmax[target].
    RTOL, ATOL = 2e-3, 2e-3

    # Small check (single tile, heavy lane padding masked out).
    batch = 8
    logits = jax.random.normal(k1, (batch, NUM_CLASSES), dtype=jnp.float32)
    targets = jax.random.randint(k2, (batch,), 0, NUM_CLASSES, dtype=jnp.int32)
    loss = jax.block_until_ready(sce_loss(logits, targets))
    ref = jax.block_until_ready(_sce_loss_ref(logits, targets))
    assert jnp.allclose(loss, ref, rtol=RTOL, atol=ATOL), (loss, ref)

    # Multi-tile check: exercises the 2-slice parallel split, the clamped
    # overflow step, partial last tile, and remainder masking.
    batch2 = 9000
    logits2 = jax.random.normal(k3, (batch2, NUM_CLASSES), dtype=jnp.float32)
    targets2 = jax.random.randint(k4, (batch2,), 0, NUM_CLASSES, dtype=jnp.int32)
    loss2 = jax.block_until_ready(sce_loss(logits2, targets2, tile_rows=32))
    ref2 = jax.block_until_ready(_sce_loss_ref(logits2, targets2))
    assert jnp.allclose(loss2, ref2, rtol=RTOL, atol=ATOL), (loss2, ref2)

    print("KERNEL_OK")
</pallas_src>

<mosaic_0001>
module attributes {stable_mosaic.version = 11 : i64} {
  func.func @_sce_kernel(%arg0: i32, %arg1: i32, %arg2: memref<6x32x128xf32, #tpu.memory_space<vmem>>, %arg3: memref<32x128xi8, #tpu.memory_space<vmem>>, %arg4: memref<1x8x128xf32, #tpu.memory_space<vmem>>) attributes {dimension_semantics = [#tpu.dimension_semantics<parallel>, #tpu.dimension_semantics<arbitrary>], iteration_bounds = array<i64: 1, 1>, scalar_prefetch = 0 : i64, scratch_operands = 0 : i64, tpu.core_type = #tpu.core_type<tc>, window_params = [{transform_indices = @transform_0, window_bounds = array<i64: 6, 32, 128>}, {transform_indices = @transform_1, window_bounds = array<i64: 32, 128>}, {transform_indices = @transform_2, window_bounds = array<i64: 1, 8, 128>}]} {
    %c0_i32 = arith.constant 0 : i32
    %0 = arith.cmpi eq, %arg1, %c0_i32 : i32
    %1 = arith.extui %0 : i1 to i32
    %c0_i32_0 = arith.constant 0 : i32
    %2 = arith.cmpi ne, %1, %c0_i32_0 : i32
    scf.if %2 {
      %cst_36 = arith.constant 0.000000e+00 : f32
      %101 = vector.broadcast %cst_36 : f32 to vector<1x8x128xf32>
      %c0_37 = arith.constant 0 : index
      %c0_38 = arith.constant 0 : index
      %c0_39 = arith.constant 0 : index
      %102 = vector.load %arg4[%c0_37, %c0_38, %c0_39] : memref<1x8x128xf32, #tpu.memory_space<vmem>>, vector<1x8x128xf32>
      tpu.vector_store %arg4[%c0_37, %c0_38, %c0_39], %101 {strides = array<i32>} : memref<1x8x128xf32, #tpu.memory_space<vmem>>, vector<1x8x128xf32>,
    } else {
    }
    %c0 = arith.constant 0 : index
    %c0_1 = arith.constant 0 : index
    %3 = vector.load %arg3[%c0, %c0_1] : memref<32x128xi8, #tpu.memory_space<vmem>>, vector<32x128xi8>
    %4 = arith.extsi %3 : vector<32x128xi8> to vector<32x128xi32>
    %c0_2 = arith.constant 0 : index
    %c0_3 = arith.constant 0 : index
    %c0_4 = arith.constant 0 : index
    %5 = vector.load %arg2[%c0_2, %c0_3, %c0_4] : memref<6x32x128xf32, #tpu.memory_space<vmem>>, vector<1x32x128xf32>
    %6 = vector.shape_cast %5 : vector<1x32x128xf32> to vector<32x128xf32>
    %c1 = arith.constant 1 : index
    %c0_5 = arith.constant 0 : index
    %c0_6 = arith.constant 0 : index
    %7 = vector.load %arg2[%c1, %c0_5, %c0_6] : memref<6x32x128xf32, #tpu.memory_space<vmem>>, vector<1x32x128xf32>
    %8 = vector.shape_cast %7 : vector<1x32x128xf32> to vector<32x128xf32>
    %c2 = arith.constant 2 : index
    %c0_7 = arith.constant 0 : index
    %c0_8 = arith.constant 0 : index
    %9 = vector.load %arg2[%c2, %c0_7, %c0_8] : memref<6x32x128xf32, #tpu.memory_space<vmem>>, vector<1x32x128xf32>
    %10 = vector.shape_cast %9 : vector<1x32x128xf32> to vector<32x128xf32>
    %c3 = arith.constant 3 : index
    %c0_9 = arith.constant 0 : index
    %c0_10 = arith.constant 0 : index
    %11 = vector.load %arg2[%c3, %c0_9, %c0_10] : memref<6x32x128xf32, #tpu.memory_space<vmem>>, vector<1x32x128xf32>
    %12 = vector.shape_cast %11 : vector<1x32x128xf32> to vector<32x128xf32>
    %c4 = arith.constant 4 : index
    %c0_11 = arith.constant 0 : index
    %c0_12 = arith.constant 0 : index
    %13 = vector.load %arg2[%c4, %c0_11, %c0_12] : memref<6x32x128xf32, #tpu.memory_space<vmem>>, vector<1x32x128xf32>
    %14 = vector.shape_cast %13 : vector<1x32x128xf32> to vector<32x128xf32>
    %c5 = arith.constant 5 : index
    %c0_13 = arith.constant 0 : index
    %c0_14 = arith.constant 0 : index
    %15 = vector.load %arg2[%c5, %c0_13, %c0_14] : memref<6x32x128xf32, #tpu.memory_space<vmem>>, vector<1x32x128xf32>
    %16 = vector.shape_cast %15 : vector<1x32x128xf32> to vector<32x128xf32>
    %17 = arith.maximumf %6, %8 : vector<32x128xf32>
    %18 = arith.maximumf %17, %10 : vector<32x128xf32>
    %19 = arith.maximumf %18, %12 : vector<32x128xf32>
    %20 = arith.maximumf %19, %14 : vector<32x128xf32>
    %21 = arith.maximumf %20, %16 : vector<32x128xf32>
    %22 = arith.subf %6, %21 : vector<32x128xf32>
    %23 = math.exp %22 : vector<32x128xf32>
    %c0_i32_15 = arith.constant 0 : i32
    %24 = vector.broadcast %c0_i32_15 : i32 to vector<32x128xi32>
    %25 = arith.cmpi eq, %4, %24 : vector<32x128xi32>
    %cst = arith.constant 0.000000e+00 : f32
    %26 = vector.broadcast %cst : f32 to vector<32x128xf32>
    %27 = arith.select %25, %6, %26 : vector<32x128xi1>, vector<32x128xf32>
    %c0_i32_16 = arith.constant 0 : i32
    %28 = vector.broadcast %c0_i32_16 : i32 to vector<32x128xi32>
    %29 = arith.cmpi eq, %4, %28 : vector<32x128xi32>
    %cst_17 = arith.constant 0.000000e+00 : f32
    %30 = vector.broadcast %cst_17 : f32 to vector<32x128xf32>
    %31 = arith.select %29, %23, %30 : vector<32x128xi1>, vector<32x128xf32>
    %32 = arith.subf %8, %21 : vector<32x128xf32>
    %33 = math.exp %32 : vector<32x128xf32>
    %34 = arith.addf %23, %33 : vector<32x128xf32>
    %c1_i32 = arith.constant 1 : i32
    %35 = vector.broadcast %c1_i32 : i32 to vector<32x128xi32>
    %36 = arith.cmpi eq, %4, %35 : vector<32x128xi32>
    %37 = arith.select %36, %8, %27 : vector<32x128xi1>, vector<32x128xf32>
    %c1_i32_18 = arith.constant 1 : i32
    %38 = vector.broadcast %c1_i32_18 : i32 to vector<32x128xi32>
    %39 = arith.cmpi eq, %4, %38 : vector<32x128xi32>
    %40 = arith.select %39, %33, %31 : vector<32x128xi1>, vector<32x128xf32>
    %41 = arith.subf %10, %21 : vector<32x128xf32>
    %42 = math.exp %41 : vector<32x128xf32>
    %43 = arith.addf %34, %42 : vector<32x128xf32>
    %c2_i32 = arith.constant 2 : i32
    %44 = vector.broadcast %c2_i32 : i32 to vector<32x128xi32>
    %45 = arith.cmpi eq, %4, %44 : vector<32x128xi32>
    %46 = arith.select %45, %10, %37 : vector<32x128xi1>, vector<32x128xf32>
    %c2_i32_19 = arith.constant 2 : i32
    %47 = vector.broadcast %c2_i32_19 : i32 to vector<32x128xi32>
    %48 = arith.cmpi eq, %4, %47 : vector<32x128xi32>
    %49 = arith.select %48, %42, %40 : vector<32x128xi1>, vector<32x128xf32>
    %50 = arith.subf %12, %21 : vector<32x128xf32>
    %51 = math.exp %50 : vector<32x128xf32>
    %52 = arith.addf %43, %51 : vector<32x128xf32>
    %c3_i32 = arith.constant 3 : i32
    %53 = vector.broadcast %c3_i32 : i32 to vector<32x128xi32>
    %54 = arith.cmpi eq, %4, %53 : vector<32x128xi32>
    %55 = arith.select %54, %12, %46 : vector<32x128xi1>, vector<32x128xf32>
    %c3_i32_20 = arith.constant 3 : i32
    %56 = vector.broadcast %c3_i32_20 : i32 to vector<32x128xi32>
    %57 = arith.cmpi eq, %4, %56 : vector<32x128xi32>
    %58 = arith.select %57, %51, %49 : vector<32x128xi1>, vector<32x128xf32>
    %59 = arith.subf %14, %21 : vector<32x128xf32>
    %60 = math.exp %59 : vector<32x128xf32>
    %61 = arith.addf %52, %60 : vector<32x128xf32>
    %c4_i32 = arith.constant 4 : i32
    %62 = vector.broadcast %c4_i32 : i32 to vector<32x128xi32>
    %63 = arith.cmpi eq, %4, %62 : vector<32x128xi32>
    %64 = arith.select %63, %14, %55 : vector<32x128xi1>, vector<32x128xf32>
    %c4_i32_21 = arith.constant 4 : i32
    %65 = vector.broadcast %c4_i32_21 : i32 to vector<32x128xi32>
    %66 = arith.cmpi eq, %4, %65 : vector<32x128xi32>
    %67 = arith.select %66, %60, %58 : vector<32x128xi1>, vector<32x128xf32>
    %68 = arith.subf %16, %21 : vector<32x128xf32>
    %69 = math.exp %68 : vector<32x128xf32>
    %70 = arith.addf %61, %69 : vector<32x128xf32>
    %c5_i32 = arith.constant 5 : i32
    %71 = vector.broadcast %c5_i32 : i32 to vector<32x128xi32>
    %72 = arith.cmpi eq, %4, %71 : vector<32x128xi32>
    %73 = arith.select %72, %16, %64 : vector<32x128xi1>, vector<32x128xf32>
    %c5_i32_22 = arith.constant 5 : i32
    %74 = vector.broadcast %c5_i32_22 : i32 to vector<32x128xi32>
    %75 = arith.cmpi eq, %4, %74 : vector<32x128xi32>
    %76 = arith.select %75, %69, %67 : vector<32x128xi1>, vector<32x128xf32>
    %77 = math.log %70 : vector<32x128xf32>
    %78 = arith.addf %77, %21 : vector<32x128xf32>
    %79 = arith.subf %78, %73 : vector<32x128xf32>
    %80 = tpu.reciprocal %70 {approx = true} : vector<32x128xf32> -> vector<32x128xf32>
    %81 = arith.mulf %76, %80 : vector<32x128xf32>
    %cst_23 = arith.constant 1.000000e+00 : f32
    %82 = vector.broadcast %cst_23 : f32 to vector<32x128xf32>
    %83 = arith.subf %82, %81 : vector<32x128xf32>
    %cst_24 = arith.constant 9.21034049 : f32
    %84 = vector.broadcast %cst_24 : f32 to vector<32x128xf32>
    %85 = arith.mulf %84, %83 : vector<32x128xf32>
    %cst_25 = arith.constant 0.699999988 : f32
    %86 = vector.broadcast %cst_25 : f32 to vector<32x128xf32>
    %87 = arith.mulf %86, %79 : vector<32x128xf32>
    %cst_26 = arith.constant 3.000000e-01 : f32
    %88 = vector.broadcast %cst_26 : f32 to vector<32x128xf32>
    %89 = arith.mulf %88, %85 : vector<32x128xf32>
    %90 = arith.addf %87, %89 : vector<32x128xf32>
    %c0_i32_27 = arith.constant 0 : i32
    %91 = vector.broadcast %c0_i32_27 : i32 to vector<32x128xi32>
    %92 = arith.cmpi sge, %4, %91 : vector<32x128xi32>
    %cst_28 = arith.constant 0.000000e+00 : f32
    %93 = vector.broadcast %cst_28 : f32 to vector<32x128xf32>
    %94 = arith.select %92, %90, %93 : vector<32x128xi1>, vector<32x128xf32>
    %95 = vector.shape_cast %94 : vector<32x128xf32> to vector<4x8x128xf32>
    %cst_29 = arith.constant dense<0.000000e+00> : vector<8x128xf32>
    %96 = vector.multi_reduction <add>, %95, %cst_29 [0] : vector<4x8x128xf32> to vector<8x128xf32>
    %c0_30 = arith.constant 0 : index
    %c0_31 = arith.constant 0 : index
    %c0_32 = arith.constant 0 : index
    %97 = vector.load %arg4[%c0_30, %c0_31, %c0_32] : memref<1x8x128xf32, #tpu.memory_space<vmem>>, vector<1x8x128xf32>
    %98 = vector.shape_cast %96 : vector<8x128xf32> to vector<1x8x128xf32>
    %99 = arith.addf %97, %98 : vector<1x8x128xf32>
    %c0_33 = arith.constant 0 : index
    %c0_34 = arith.constant 0 : index
    %c0_35 = arith.constant 0 : index
    %100 = vector.load %arg4[%c0_33, %c0_34, %c0_35] : memref<1x8x128xf32, #tpu.memory_space<vmem>>, vector<1x8x128xf32>
    tpu.vector_store %arg4[%c0_33, %c0_34, %c0_35], %99 {strides = array<i32>} : memref<1x8x128xf32, #tpu.memory_space<vmem>>, vector<1x8x128xf32>,
    return
  }
  func.func @transform_0(%arg0: i32, %arg1: i32) -> (i32, i32, i32) {
    %c1_i32 = arith.constant 1 : i32
    %0 = arith.muli %arg0, %c1_i32 : i32
    %1 = arith.addi %0, %arg1 : i32
    %c0_i32 = arith.constant 0 : i32
    %c0_i32_0 = arith.constant 0 : i32
    %c0_i32_1 = arith.constant 0 : i32
    return %c0_i32, %1, %c0_i32_0 : i32, i32, i32
  }
  func.func @transform_1(%arg0: i32, %arg1: i32) -> (i32, i32) {
    %c1_i32 = arith.constant 1 : i32
    %0 = arith.muli %arg0, %c1_i32 : i32
    %1 = arith.addi %0, %arg1 : i32
    %c0_i32 = arith.constant 0 : i32
    %c0_i32_0 = arith.constant 0 : i32
    return %1, %c0_i32 : i32, i32
  }
  func.func @transform_2(%arg0: i32, %arg1: i32) -> (i32, i32, i32) {
    %c0_i32 = arith.constant 0 : i32
    %c0_i32_0 = arith.constant 0 : i32
    %c0_i32_1 = arith.constant 0 : i32
    return %arg0, %c0_i32, %c0_i32_0 : i32, i32, i32
  }
}

</mosaic_0001>

<llo_original>
// kernel: tpu_custom_call.1
$region0: #{tpu_custom_call.1}
  #allocation0 [shape = 'u32[]', space=smem, size = 0x4, offset = 0x4, fixed_abs, tag = 'smem constant byte address 0x4 - core index']
  #allocation1 [shape = 'u32[144,128]{1,0:T(1,128)}', space=vmem, size = 0x12000, scoped, tag = 'internal scratch']
  %s0 = inlined_call_operand.hbm [shape: f32[6,32,128], index: 0, kind: input, shape index: {}]
  %s1 = inlined_call_operand.hbm [shape: s8[32,128], index: 1, kind: input, shape index: {}]
  %s2 = inlined_call_operand.hbm [shape: f32[1,8,128], index: 2, kind: output, shape index: {}]
  %s3 = sld [smem:[#allocation0]]
  $region30: #{tpu_custom_call.1} parent=0
    _
  %s5 = ssub.s32 1, %s3
  %s6 = scalar_select 0, %s5, %s3
  $region1: #{tpu_custom_call.1} parent=0
    #allocation2 [shape = 'u8[98304]{0}', space=vmem, size = 0x18000, scoped, tag = 'input window, operand 0, single buffered']
    #allocation3 [shape = 's32[1]{0}', space=sflag, size = 0x4, scoped, tag = 'scoped memory for tpu_custom_call.1']
    #allocation4 [shape = 's32[1]{0}', space=sflag, size = 0x4, scoped, tag = 'scoped memory for tpu_custom_call.1']
    #allocation5 [shape = 'u8[4096]{0}', space=vmem, size = 0x1000, scoped, tag = 'input window, operand 1, single buffered']
    #allocation6 [shape = 's32[1]{0}', space=sflag, size = 0x4, scoped, tag = 'scoped memory for tpu_custom_call.1']
    #allocation7 [shape = 'u8[4096]{0}', space=vmem, size = 0x1000, scoped, tag = 'output window, operand 0, single buffered']
    %7 = vsyncpa [#allocation3], 0
    %8 = vsyncpa [#allocation6], 0
    %9 = vsyncpa [#allocation4], 0
    // Predicated region
    $region2: #{tpu_custom_call.1} parent=1 // pred_check
      _
    $region3: #{tpu_custom_call.1} parent=1 // pred_check_branch
      %11 = sbr.rel (0) target = $region5
    $region4: #{tpu_custom_call.1} parent=1 // pred_region
      %s12 = sadd.s32 0, 0
      %s13 = smul.u32 4, %s12
      %s15 = ssub.s32 3072, 3072
      %16 = vsyncadd [#allocation3], %s15
      %s17 = smul.addr %s13, 128
      %s18 = scalar_lea.hbm %s0, %s17
      %s19 = sshll.u32 [#allocation2], 4
      %s20 = int_to_ptr.vmem [resolvable:$true] %s19
      %25 = dma.hbm_to_vmem [thread:$0]  %s18, 3072, %s20, [#allocation3], 128, 128, 8
    $region5: #{tpu_custom_call.1} parent=1 // pred_fallthru
      _
    // Predicated region
    $region6: #{tpu_custom_call.1} parent=1 // pred_check
      _
    $region7: #{tpu_custom_call.1} parent=1 // pred_check_branch
      %27 = sbr.rel (0) target = $region9
    $region8: #{tpu_custom_call.1} parent=1 // pred_region
      %s28 = sadd.s32 0, 0
      %s30 = ssub.s32 128, 128
      %31 = vsyncadd [#allocation6], %s30
      %s32 = smul.addr %s28, 128
      %s33 = scalar_lea.hbm %s1, %s32
      %s35 = sshll.u32 [#allocation5], 4
      %s36 = int_to_ptr.vmem [resolvable:$true] %s35
      %38 = dma.hbm_to_vmem [thread:$0]  %s33, 128, %s36, [#allocation6]
    $region9: #{tpu_custom_call.1} parent=1 // pred_fallthru
      _
    // Predicated region
    $region10: #{tpu_custom_call.1} parent=1 // pred_check
      _
    $region11: #{tpu_custom_call.1} parent=1 // pred_check_branch
      %40 = sbr.rel (0) target = $region13
    $region12: #{tpu_custom_call.1} parent=1 // pred_region
      %41 = dma.done [#allocation3], 3072
    $region13: #{tpu_custom_call.1} parent=1 // pred_fallthru
      _
    // Predicated region
    $region14: #{tpu_custom_call.1} parent=1 // pred_check
      _
    $region15: #{tpu_custom_call.1} parent=1 // pred_check_branch
      %43 = sbr.rel (0) target = $region17
    $region16: #{tpu_custom_call.1} parent=1 // pred_region
      %44 = dma.done [#allocation6], 128
    $region17: #{tpu_custom_call.1} parent=1 // pred_fallthru
      _
    %s45 = sadd.s32 0, 0
    %s46 = smul.u32 4, %s45
    %s47 = sadd.s32 0, 0
    %p48 = scmp.eq.s32.totalorder 0, 0
    // Predicated region
    $region18: #{tpu_custom_call.1} parent=1 // pred_check
      %p49 = pneg %p48
    $region19: #{tpu_custom_call.1} parent=1 // pred_check_branch
      %51 = sbr.rel (%p49) target = $region21
    $region20: #{tpu_custom_call.1} parent=1 // pred_region
      %52 = vst [vmem:[#allocation7] sm:$0xff] 0.0
    $region21: #{tpu_custom_call.1} parent=1 // pred_fallthru
      _
    %v53 = vld [vmem:[#allocation5] sm:$0xff]
    %v54 = vunpack.c.0.s8 %v53
    %v55 = vunpack.c.1.s8 %v53
    %v56 = vunpack.c.2.s8 %v53
    %v57 = vunpack.c.3.s8 %v53
    %v58 = vld [vmem:[#allocation2] sm:$0xff]
    %v59 = vld [vmem:[#allocation2 + $0x8] sm:$0xff]
    %v60 = vld [vmem:[#allocation2 + $0x10] sm:$0xff]
    %v61 = vld [vmem:[#allocation2 + $0x18] sm:$0xff]
    %s62 = scalar_lea.vmem [#allocation2], 32
    %v63 = vld [vmem:[%s62] sm:$0xff]
    %v64 = vld [vmem:[%s62 + $0x8] sm:$0xff]
    %v65 = vld [vmem:[%s62 + $0x10] sm:$0xff]
    %v66 = vld [vmem:[%s62 + $0x18] sm:$0xff]
    %s67 = scalar_lea.vmem [#allocation2], 64
    %v68 = vld [vmem:[%s67] sm:$0xff]
    %v69 = vld [vmem:[%s67 + $0x8] sm:$0xff]
    %v70 = vld [vmem:[%s67 + $0x10] sm:$0xff]
    %v71 = vld [vmem:[%s67 + $0x18] sm:$0xff]
    %s72 = scalar_lea.vmem [#allocation2], 96
    %v73 = vld [vmem:[%s72] sm:$0xff]
    %v74 = vld [vmem:[%s72 + $0x8] sm:$0xff]
    %v75 = vld [vmem:[%s72 + $0x10] sm:$0xff]
    %v76 = vld [vmem:[%s72 + $0x18] sm:$0xff]
    %s77 = scalar_lea.vmem [#allocation2], 128
    %v78 = vld [vmem:[%s77] sm:$0xff]
    %v79 = vld [vmem:[%s77 + $0x8] sm:$0xff]
    %v80 = vld [vmem:[%s77 + $0x10] sm:$0xff]
    %v81 = vld [vmem:[%s77 + $0x18] sm:$0xff]
    %s82 = scalar_lea.vmem [#allocation2], 160
    %v83 = vld [vmem:[%s82] sm:$0xff]
    %v84 = vld [vmem:[%s82 + $0x8] sm:$0xff]
    %v85 = vld [vmem:[%s82 + $0x10] sm:$0xff]
    %v86 = vld [vmem:[%s82 + $0x18] sm:$0xff]
    %v87 = vmax.f32 %v58, %v63
    %v88 = vmax.f32 %v59, %v64
    %v89 = vmax.f32 %v60, %v65
    %v90 = vmax.f32 %v61, %v66
    %v91 = vmax.f32 %v87, %v68
    %v92 = vmax.f32 %v88, %v69
    %v93 = vmax.f32 %v89, %v70
    %v94 = vmax.f32 %v90, %v71
    %v95 = vmax.f32 %v91, %v73
    %v96 = vmax.f32 %v92, %v74
    %v97 = vmax.f32 %v93, %v75
    %v98 = vmax.f32 %v94, %v76
    %v99 = vmax.f32 %v95, %v78
    %v100 = vmax.f32 %v96, %v79
    %v101 = vmax.f32 %v97, %v80
    %v102 = vmax.f32 %v98, %v81
    %v103 = vmax.f32 %v99, %v83
    %v104 = vmax.f32 %v100, %v84
    %v105 = vmax.f32 %v101, %v85
    %v106 = vmax.f32 %v102, %v86
    %v107 = vsub.f32 %v58, %v103
    %v108 = vsub.f32 %v59, %v104
    %v109 = vsub.f32 %v60, %v105
    %v110 = vsub.f32 %v61, %v106
    %v111 = vmul.f32 %v107, 1.442695
    %v112 = vpow.pop %v111
    %v113 = vmul.f32 %v108, 1.442695
    %v114 = vpow.pop %v113
    %v115 = vmul.f32 %v109, 1.442695
    %v116 = vpow.pop %v115
    %v117 = vmul.f32 %v110, 1.442695
    %v118 = vpow.pop %v117
    %vm119 = vcmp.eq.s32.totalorder %v54, 0
    %vm120 = vcmp.eq.s32.totalorder %v55, 0
    %vm121 = vcmp.eq.s32.totalorder %v56, 0
    %vm122 = vcmp.eq.s32.totalorder %v57, 0
    %v123 = vsel %vm119, %v58, 0.0
    %v124 = vsel %vm120, %v59, 0.0
    %v125 = vsel %vm121, %v60, 0.0
    %v126 = vsel %vm122, %v61, 0.0
    %v127 = vsel %vm119, %v112, 0.0
    %v128 = vsel %vm120, %v114, 0.0
    %v129 = vsel %vm121, %v116, 0.0
    %v130 = vsel %vm122, %v118, 0.0
    %v131 = vsub.f32 %v63, %v103
    %v132 = vsub.f32 %v64, %v104
    %v133 = vsub.f32 %v65, %v105
    %v134 = vsub.f32 %v66, %v106
    %v135 = vmul.f32 %v131, 1.442695
    %v136 = vpow.pop %v135
    %v137 = vmul.f32 %v132, 1.442695
    %v138 = vpow.pop %v137
    %v139 = vmul.f32 %v133, 1.442695
    %v140 = vpow.pop %v139
    %v141 = vmul.f32 %v134, 1.442695
    %v142 = vpow.pop %v141
    %v143 = vadd.f32 %v112, %v136
    %v144 = vadd.f32 %v114, %v138
    %v145 = vadd.f32 %v116, %v140
    %v146 = vadd.f32 %v118, %v142
    %vm147 = vcmp.eq.s32.totalorder %v54, 1
    %vm148 = vcmp.eq.s32.totalorder %v55, 1
    %vm149 = vcmp.eq.s32.totalorder %v56, 1
    %vm150 = vcmp.eq.s32.totalorder %v57, 1
    %v151 = vsel %vm147, %v63, %v123
    %v152 = vsel %vm148, %v64, %v124
    %v153 = vsel %vm149, %v65, %v125
    %v154 = vsel %vm150, %v66, %v126
    %v155 = vsel %vm147, %v136, %v127
    %v156 = vsel %vm148, %v138, %v128
    %v157 = vsel %vm149, %v140, %v129
    %v158 = vsel %vm150, %v142, %v130
    %v159 = vsub.f32 %v68, %v103
    %v160 = vsub.f32 %v69, %v104
    %v161 = vsub.f32 %v70, %v105
    %v162 = vsub.f32 %v71, %v106
    %v163 = vmul.f32 %v159, 1.442695
    %v164 = vpow.pop %v163
    %v165 = vmul.f32 %v160, 1.442695
    %v166 = vpow.pop %v165
    %v167 = vmul.f32 %v161, 1.442695
    %v168 = vpow.pop %v167
    %v169 = vmul.f32 %v162, 1.442695
    %v170 = vpow.pop %v169
    %v171 = vadd.f32 %v143, %v164
    %v172 = vadd.f32 %v144, %v166
    %v173 = vadd.f32 %v145, %v168
    %v174 = vadd.f32 %v146, %v170
    %vm175 = vcmp.eq.s32.totalorder %v54, 2
    %vm176 = vcmp.eq.s32.totalorder %v55, 2
    %vm177 = vcmp.eq.s32.totalorder %v56, 2
    %vm178 = vcmp.eq.s32.totalorder %v57, 2
    %v179 = vsel %vm175, %v68, %v151
    %v180 = vsel %vm176, %v69, %v152
    %v181 = vsel %vm177, %v70, %v153
    %v182 = vsel %vm178, %v71, %v154
    %v183 = vsel %vm175, %v164, %v155
    %v184 = vsel %vm176, %v166, %v156
    %v185 = vsel %vm177, %v168, %v157
    %v186 = vsel %vm178, %v170, %v158
    %v187 = vsub.f32 %v73, %v103
    %v188 = vsub.f32 %v74, %v104
    %v189 = vsub.f32 %v75, %v105
    %v190 = vsub.f32 %v76, %v106
    %v191 = vmul.f32 %v187, 1.442695
    %v192 = vpow.pop %v191
    %v193 = vmul.f32 %v188, 1.442695
    %v194 = vpow.pop %v193
    %v195 = vmul.f32 %v189, 1.442695
    %v196 = vpow.pop %v195
    %v197 = vmul.f32 %v190, 1.442695
    %v198 = vpow.pop %v197
    %v199 = vadd.f32 %v171, %v192
    %v200 = vadd.f32 %v172, %v194
    %v201 = vadd.f32 %v173, %v196
    %v202 = vadd.f32 %v174, %v198
    %vm203 = vcmp.eq.s32.totalorder %v54, 3
    %vm204 = vcmp.eq.s32.totalorder %v55, 3
    %vm205 = vcmp.eq.s32.totalorder %v56, 3
    %vm206 = vcmp.eq.s32.totalorder %v57, 3
    %v207 = vsel %vm203, %v73, %v179
    %v208 = vsel %vm204, %v74, %v180
    %v209 = vsel %vm205, %v75, %v181
    %v210 = vsel %vm206, %v76, %v182
    %v211 = vsel %vm203, %v192, %v183
    %v212 = vsel %vm204, %v194, %v184
    %v213 = vsel %vm205, %v196, %v185
    %v214 = vsel %vm206, %v198, %v186
    %v215 = vsub.f32 %v78, %v103
    %v216 = vsub.f32 %v79, %v104
    %v217 = vsub.f32 %v80, %v105
    %v218 = vsub.f32 %v81, %v106
    %v219 = vmul.f32 %v215, 1.442695
    %v220 = vpow.pop %v219
    %v221 = vmul.f32 %v216, 1.442695
    %v222 = vpow.pop %v221
    %v223 = vmul.f32 %v217, 1.442695
    %v224 = vpow.pop %v223
    %v225 = vmul.f32 %v218, 1.442695
    %v226 = vpow.pop %v225
    %v227 = vadd.f32 %v199, %v220
    %v228 = vadd.f32 %v200, %v222
    %v229 = vadd.f32 %v201, %v224
    %v230 = vadd.f32 %v202, %v226
    %vm231 = vcmp.eq.s32.totalorder %v54, 4
    %vm232 = vcmp.eq.s32.totalorder %v55, 4
    %vm233 = vcmp.eq.s32.totalorder %v56, 4
    %vm234 = vcmp.eq.s32.totalorder %v57, 4
    %v235 = vsel %vm231, %v78, %v207
    %v236 = vsel %vm232, %v79, %v208
    %v237 = vsel %vm233, %v80, %v209
    %v238 = vsel %vm234, %v81, %v210
    %v239 = vsel %vm231, %v220, %v211
    %v240 = vsel %vm232, %v222, %v212
    %v241 = vsel %vm233, %v224, %v213
    %v242 = vsel %vm234, %v226, %v214
    %v243 = vsub.f32 %v83, %v103
    %v244 = vsub.f32 %v84, %v104
    %v245 = vsub.f32 %v85, %v105
    %v246 = vsub.f32 %v86, %v106
    %v247 = vmul.f32 %v243, 1.442695
    %v248 = vpow.pop %v247
    %v249 = vmul.f32 %v244, 1.442695
    %v250 = vpow.pop %v249
    %v251 = vmul.f32 %v245, 1.442695
    %v252 = vpow.pop %v251
    %v253 = vmul.f32 %v246, 1.442695
    %v254 = vpow.pop %v253
    %v255 = vadd.f32 %v227, %v248
    %v256 = vadd.f32 %v228, %v250
    %v257 = vadd.f32 %v229, %v252
    %v258 = vadd.f32 %v230, %v254
    %vm259 = vcmp.eq.s32.totalorder %v54, 5
    %vm260 = vcmp.eq.s32.totalorder %v55, 5
    %vm261 = vcmp.eq.s32.totalorder %v56, 5
    %vm262 = vcmp.eq.s32.totalorder %v57, 5
    %v263 = vsel %vm259, %v83, %v235
    %v264 = vsel %vm260, %v84, %v236
    %v265 = vsel %vm261, %v85, %v237
    %v266 = vsel %vm262, %v86, %v238
    %v267 = vsel %vm259, %v248, %v239
    %v268 = vsel %vm260, %v250, %v240
    %v269 = vsel %vm261, %v252, %v241
    %v270 = vsel %vm262, %v254, %v242
    %v271 = vlog2.pop %v255
    %v272 = vmul.f32 %v271, 0.6931472
    %v273 = vlog2.pop %v256
    %v274 = vmul.f32 %v273, 0.6931472
    %v275 = vlog2.pop %v257
    %v276 = vmul.f32 %v275, 0.6931472
    %v277 = vlog2.pop %v258
    %v278 = vmul.f32 %v277, 0.6931472
    %v279 = vadd.f32 %v272, %v103
    %v280 = vadd.f32 %v274, %v104
    %v281 = vadd.f32 %v276, %v105
    %v282 = vadd.f32 %v278, %v106
    %v283 = vsub.f32 %v279, %v263
    %v284 = vsub.f32 %v280, %v264
    %v285 = vsub.f32 %v281, %v265
    %v286 = vsub.f32 %v282, %v266
    %v287 = vrcp.pop %v255
    %v288 = vrcp.pop %v256
    %v289 = vrcp.pop %v257
    %v290 = vrcp.pop %v258
    %v291 = vmul.f32 %v267, %v287
    %v292 = vmul.f32 %v268, %v288
    %v293 = vmul.f32 %v269, %v289
    %v294 = vmul.f32 %v270, %v290
    %v295 = vsub.f32 1.0, %v291
    %v296 = vsub.f32 1.0, %v292
    %v297 = vsub.f32 1.0, %v293
    %v298 = vsub.f32 1.0, %v294
    %v299 = vmul.f32 %v295, 9.2103405
    %v300 = vmul.f32 %v296, 9.2103405
    %v301 = vmul.f32 %v297, 9.2103405
    %v302 = vmul.f32 %v298, 9.2103405
    %v303 = vmul.f32 %v283, 0.7
    %v304 = vmul.f32 %v284, 0.7
    %v305 = vmul.f32 %v285, 0.7
    %v306 = vmul.f32 %v286, 0.7
    %v307 = vmul.f32 %v299, 0.3
    %v308 = vmul.f32 %v300, 0.3
    %v309 = vmul.f32 %v301, 0.3
    %v310 = vmul.f32 %v302, 0.3
    %v311 = vadd.f32 %v303, %v307
    %v312 = vadd.f32 %v304, %v308
    %v313 = vadd.f32 %v305, %v309
    %v314 = vadd.f32 %v306, %v310
    %vm315 = vcmp.ge.s32.totalorder %v54, 0
    %vm316 = vcmp.ge.s32.totalorder %v55, 0
    %vm317 = vcmp.ge.s32.totalorder %v56, 0
    %vm318 = vcmp.ge.s32.totalorder %v57, 0
    %v319 = vsel %vm315, %v311, 0.0
    %v320 = vsel %vm316, %v312, 0.0
    %v321 = vsel %vm317, %v313, 0.0
    %v322 = vsel %vm318, %v314, 0.0
    %v323 = vadd.f32 %v319, %v320
    %v324 = vadd.f32 %v323, %v321
    %v325 = vadd.f32 %v324, %v322
    %v326 = vld [vmem:[#allocation7] sm:$0xff]
    %v327 = vadd.f32 %v326, %v325
    %328 = vst [vmem:[#allocation7] sm:$0xff] %v327
    // Predicated region
    $region22: #{tpu_custom_call.1} parent=1 // pred_check
      _
    $region23: #{tpu_custom_call.1} parent=1 // pred_check_branch
      %330 = sbr.rel (0) target = $region25
    $region24: #{tpu_custom_call.1} parent=1 // pred_region
      %s332 = ssub.s32 128, 128
      %333 = vsyncadd [#allocation4], %s332
      %s335 = sshll.u32 [#allocation7], 4
      %s336 = int_to_ptr.vmem [resolvable:$true] %s335
      %338 = dma.vmem_to_hbm [thread:$0]  %s336, 128, %s2, [#allocation4]
    $region25: #{tpu_custom_call.1} parent=1 // pred_fallthru
      _
    // Predicated region
    $region26: #{tpu_custom_call.1} parent=1 // pred_check
      _
    $region27: #{tpu_custom_call.1} parent=1 // pred_check_branch
      %340 = sbr.rel (0) target = $region29
    $region28: #{tpu_custom_call.1} parent=1 // pred_region
      %341 = dma.done [#allocation4], 128
    $region29: #{tpu_custom_call.1} parent=1 // pred_fallthru
      _
    %342 = vsyncpa [#allocation3], 1
    %343 = vsyncpa [#allocation6], 1
    %344 = vsyncpa [#allocation4], 1

</llo_original>
